<compile_context>
chip_gen: v7x
topology: tpu7x:2x2x1
jax: 0.10.0
libtpu: 0.0.40
codegen_flags: <defaults>
</compile_context>

<pallas_src>
import jax
import jax.numpy as jnp
from jax.experimental import pallas as pl
from jax.experimental.pallas import tpu as pltpu

EPS = 1e-5  # NOTE: module computes (x - mean) / (sqrt(var) + eps): eps is added to
            # std, NOT to var (intentionally NOT torch.nn.LayerNorm semantics).


def prenorm_kernel(x_ref, w_ref, wsum_ref, bias_ref, o_ref):
    # x_ref: (C, TS) tile -- channels on sublanes (reduction axis), spatial on lanes.
    # w_ref: (C_out, C_in) folded weight, native dtype.
    # wsum_ref / bias_ref: (C_out, 1), f32.
    x = x_ref[...]                                        # native dtype
    xf = x.astype(jnp.float32)

    # Channel stats per spatial column (torch var(dim=1, unbiased=False)):
    mean = jnp.mean(xf, axis=0, keepdims=True)            # (1, TS)
    ex2 = jnp.mean(xf * xf, axis=0, keepdims=True)        # (1, TS)
    var = jnp.maximum(ex2 - mean * mean, 0.0)
    # eps added to std (module semantics); exact reciprocal -- EUP is idle here.
    inv = pl.reciprocal(jnp.sqrt(var) + EPS, approx=False)  # (1, TS)

    # fn = 1x1 conv over channels == MXU matmul on the RAW tile, f32 accumulate;
    # LN (mean/inv) and affine are applied post-matmul via the folded terms.
    y = jnp.dot(w_ref[...], x.astype(w_ref.dtype),
                preferred_element_type=jnp.float32)        # (C_out, TS)
    o = (y - wsum_ref[...] * mean) * inv + bias_ref[...]
    o_ref[...] = o.astype(o_ref.dtype)


def _vmem_capacity_bytes():
    try:
        return int(pltpu.get_tpu_info().vmem_capacity_bytes)
    except Exception:
        return 128 * 1024 * 1024  # v5e/v6e-like default


def _pick_tile_s(S, C, itemsize, target_bytes):
    """Spatial tile: multiple of 128 (lane-dense, unmasked stores except for a
    possible partial tail block), keeping one x tile under ~target_bytes."""
    if S <= 128:
        return S  # full-extent last dim is always legal
    cand = (target_bytes // (C * itemsize)) // 128 * 128
    cand = max(128, cand)
    # Cap at the largest 128-multiple not exceeding S (tail handled by cdiv grid).
    cap = S if S % 128 == 0 else (S // 128) * 128
    return min(cand, cap)


def prenorm_pallas(x_nchw, g, b, conv_w, conv_b, *, tile_s=None):
    """x_nchw: (N, C, H, W).  g, b: LayerNorm affine (any shape with C elements).
    conv_w: (C_out, C_in) for the 1x1 conv `fn`.  conv_b: (C_out,)."""
    N, C, H, W = x_nchw.shape
    S = H * W
    x3 = x_nchw.reshape(N, C, S)                # free reshape (trailing dims merge)
    C_out = conv_w.shape[0]

    # ---- host-side fold of LN affine into the conv weight / bias -------------
    g_f = g.astype(jnp.float32).reshape(1, C)
    b_f = b.astype(jnp.float32).reshape(C, 1)
    w_f32 = conv_w.astype(jnp.float32)
    w_eff = (w_f32 * g_f).astype(conv_w.dtype)                      # (C_out, C_in)
    wsum = jnp.sum(w_eff.astype(jnp.float32), axis=1, keepdims=True)  # (C_out, 1)
    bias_eff = w_f32 @ b_f + conv_b.astype(jnp.float32).reshape(C_out, 1)

    # ---- per-generation sizing ------------------------------------------------
    vmem_cap_hw = _vmem_capacity_bytes()
    is_v7x_like = vmem_cap_hw <= 64 * 1024 * 1024
    target_bytes = (4 << 20) if is_v7x_like else (2 << 20)
    vmem_ceiling = (48 << 20) if is_v7x_like else (64 << 20)

    elt = x_nchw.dtype.itemsize
    if tile_s is None:
        tile_s = _pick_tile_s(S, C, elt, target_bytes)
        # v7x has 2 TensorCores sharded over the "parallel" axes; make sure both
        # get at least one grid step.
        if (is_v7x_like and N * pl.cdiv(S, tile_s) < 2
                and tile_s >= 256 and tile_s % 128 == 0):
            tile_s = max(128, (tile_s // 2) // 128 * 128)

    # VMEM budget: x/out tiles double-buffered; weight/wsum/bias are resident
    # (constant index_map -> no double buffer); plus f32 temp headroom.
    vmem_needed = (2 * 2 * C * tile_s * elt
                   + C_out * C * w_eff.dtype.itemsize
                   + 2 * C_out * 4
                   + 2 * C_out * tile_s * 4)
    vmem_limit = int(min(vmem_ceiling, max(32 * 1024 * 1024, 2 * vmem_needed)))

    out3 = pl.pallas_call(
        prenorm_kernel,
        out_shape=jax.ShapeDtypeStruct((N, C_out, S), x_nchw.dtype),
        grid_spec=pltpu.PrefetchScalarGridSpec(
            num_scalar_prefetch=0,
            grid=(N, pl.cdiv(S, tile_s)),
            in_specs=[
                pl.BlockSpec((None, C, tile_s), lambda n, s: (n, 0, s)),   # x
                pl.BlockSpec((C_out, C), lambda n, s: (0, 0)),             # W'
                pl.BlockSpec((C_out, 1), lambda n, s: (0, 0)),             # wsum
                pl.BlockSpec((C_out, 1), lambda n, s: (0, 0)),             # bias'
            ],
            out_specs=pl.BlockSpec((None, C_out, tile_s), lambda n, s: (n, 0, s)),
        ),
        compiler_params=pltpu.CompilerParams(
            dimension_semantics=("parallel", "parallel"),
            vmem_limit_bytes=vmem_limit),
    )(x3, w_eff, wsum, bias_eff)

    return out3.reshape(N, C_out, H, W)         # free reshape, no HBM copy


def prenorm_reference(x_nchw, g, b, conv_w, conv_b):
    """Pure-JAX reference mirroring the PyTorch module (norm, then 1x1 conv)."""
    mean = jnp.mean(x_nchw, axis=1, keepdims=True)
    var = jnp.mean((x_nchw - mean) ** 2, axis=1, keepdims=True)
    std = jnp.sqrt(var)
    xn = (x_nchw - mean) / (std + EPS) * g.reshape(1, -1, 1, 1) + b.reshape(1, -1, 1, 1)
    y = jnp.einsum('nchw,oc->nohw', xn, conv_w) + conv_b.reshape(1, -1, 1, 1)
    return y


if __name__ == "__main__":
    key = jax.random.PRNGKey(0)
    N, C, H, W = 2, 32, 16, 16  # batch=2, dim=32, spatial=16x16

    k_x, k_w, k_b = jax.random.split(key, 3)
    x = jax.random.normal(k_x, (N, C, H, W), dtype=jnp.float32)

    # LayerNorm params as in __init__: g = ones(1, dim, 1, 1), b = zeros(1, dim, 1, 1)
    g = jnp.ones((C,), dtype=jnp.float32)
    b = jnp.zeros((C,), dtype=jnp.float32)

    # Deterministic synthetic parameters for fn = 1x1 Conv2d(dim, dim).
    # TODO(synk): `fn` is an arbitrary module in PyTorch; only the 1x1-conv case
    # is fused here.
    conv_w = jax.random.normal(k_w, (C, C), dtype=jnp.float32) * (1.0 / jnp.sqrt(C))
    conv_b = jax.random.normal(k_b, (C,), dtype=jnp.float32) * 0.01

    out = prenorm_pallas(x, g, b, conv_w, conv_b)
    out = jax.block_until_ready(out)

    ref = prenorm_reference(x, g, b, conv_w, conv_b)
    assert out.shape == (N, C, H, W)
    # Tolerance covers default (reduced-precision) MXU passes on both sides and
    # the E[x^2]-mean^2 variance refactor; real bugs show up as O(0.1+).
    assert jnp.allclose(out, ref, atol=2e-2, rtol=2e-2), "mismatch vs reference"

    print("KERNEL_OK")
</pallas_src>

<mosaic_0001>
module attributes {stable_mosaic.version = 11 : i64} {
  func.func @prenorm_kernel(%arg0: i32, %arg1: i32, %arg2: memref<1x32x256xf32, #tpu.memory_space<vmem>>, %arg3: memref<32x32xf32, #tpu.memory_space<vmem>>, %arg4: memref<32x1xf32, #tpu.memory_space<vmem>>, %arg5: memref<32x1xf32, #tpu.memory_space<vmem>>, %arg6: memref<1x32x256xf32, #tpu.memory_space<vmem>>) attributes {dimension_semantics = [#tpu.dimension_semantics<parallel>, #tpu.dimension_semantics<parallel>], iteration_bounds = array<i64: 2, 1>, scalar_prefetch = 0 : i64, scratch_operands = 0 : i64, tpu.core_type = #tpu.core_type<tc>, window_params = [{transform_indices = @transform_0, window_bounds = array<i64: 1, 32, 256>}, {pipeline_mode = #tpu.pipeline_mode<synchronous>, transform_indices = @transform_1, window_bounds = array<i64: 32, 32>}, {pipeline_mode = #tpu.pipeline_mode<synchronous>, transform_indices = @transform_2, window_bounds = array<i64: 32, 1>}, {pipeline_mode = #tpu.pipeline_mode<synchronous>, transform_indices = @transform_3, window_bounds = array<i64: 32, 1>}, {transform_indices = @transform_4, window_bounds = array<i64: 1, 32, 256>}]} {
    %c0 = arith.constant 0 : index
    %c0_0 = arith.constant 0 : index
    %c0_1 = arith.constant 0 : index
    %0 = vector.load %arg2[%c0, %c0_0, %c0_1] : memref<1x32x256xf32, #tpu.memory_space<vmem>>, vector<1x32x256xf32>
    %1 = vector.shape_cast %0 : vector<1x32x256xf32> to vector<32x256xf32>
    %cst = arith.constant dense<0.000000e+00> : vector<256xf32>
    %2 = vector.multi_reduction <add>, %1, %cst [0] : vector<32x256xf32> to vector<256xf32>
    %3 = vector.shape_cast %2 : vector<256xf32> to vector<1x256xf32>
    %cst_2 = arith.constant 3.200000e+01 : f32
    %4 = vector.broadcast %cst_2 : f32 to vector<1x256xf32>
    %5 = arith.divf %3, %4 : vector<1x256xf32>
    %6 = arith.mulf %1, %1 : vector<32x256xf32>
    %cst_3 = arith.constant dense<0.000000e+00> : vector<256xf32>
    %7 = vector.multi_reduction <add>, %6, %cst_3 [0] : vector<32x256xf32> to vector<256xf32>
    %8 = vector.shape_cast %7 : vector<256xf32> to vector<1x256xf32>
    %cst_4 = arith.constant 3.200000e+01 : f32
    %9 = vector.broadcast %cst_4 : f32 to vector<1x256xf32>
    %10 = arith.divf %8, %9 : vector<1x256xf32>
    %11 = arith.mulf %5, %5 : vector<1x256xf32>
    %12 = arith.subf %10, %11 : vector<1x256xf32>
    %cst_5 = arith.constant 0.000000e+00 : f32
    %13 = vector.broadcast %cst_5 : f32 to vector<1x256xf32>
    %14 = arith.maximumf %12, %13 : vector<1x256xf32>
    %15 = math.sqrt %14 : vector<1x256xf32>
    %cst_6 = arith.constant 9.99999974E-6 : f32
    %16 = vector.broadcast %cst_6 : f32 to vector<1x256xf32>
    %17 = arith.addf %15, %16 : vector<1x256xf32>
    %18 = tpu.reciprocal %17 : vector<1x256xf32> -> vector<1x256xf32>
    %c0_7 = arith.constant 0 : index
    %c0_8 = arith.constant 0 : index
    %19 = vector.load %arg3[%c0_7, %c0_8] : memref<32x32xf32, #tpu.memory_space<vmem>>, vector<32x32xf32>
    %cst_9 = arith.constant dense<0.000000e+00> : vector<32x256xf32>
    %20 = tpu.matmul %19, %1, %cst_9 {dimension_numbers = #tpu.dot_dimension_numbers<[1], [0], [0], [1], [0, 0, 1, 1], [], []>} : vector<32x32xf32>, vector<32x256xf32>, vector<32x256xf32> -> vector<32x256xf32>
    %c0_10 = arith.constant 0 : index
    %c0_11 = arith.constant 0 : index
    %21 = vector.load %arg4[%c0_10, %c0_11] : memref<32x1xf32, #tpu.memory_space<vmem>>, vector<32x1xf32>
    %22 = vector.broadcast %21 : vector<32x1xf32> to vector<32x256xf32>
    %23 = vector.broadcast %5 : vector<1x256xf32> to vector<32x256xf32>
    %24 = arith.mulf %22, %23 : vector<32x256xf32>
    %25 = arith.subf %20, %24 : vector<32x256xf32>
    %26 = vector.broadcast %18 : vector<1x256xf32> to vector<32x256xf32>
    %27 = arith.mulf %25, %26 : vector<32x256xf32>
    %c0_12 = arith.constant 0 : index
    %c0_13 = arith.constant 0 : index
    %28 = vector.load %arg5[%c0_12, %c0_13] : memref<32x1xf32, #tpu.memory_space<vmem>>, vector<32x1xf32>
    %29 = vector.broadcast %28 : vector<32x1xf32> to vector<32x256xf32>
    %30 = arith.addf %27, %29 : vector<32x256xf32>
    %c0_14 = arith.constant 0 : index
    %c0_15 = arith.constant 0 : index
    %c0_16 = arith.constant 0 : index
    %31 = vector.load %arg6[%c0_14, %c0_15, %c0_16] : memref<1x32x256xf32, #tpu.memory_space<vmem>>, vector<1x32x256xf32>
    %32 = vector.shape_cast %31 : vector<1x32x256xf32> to vector<32x256xf32>
    %33 = vector.shape_cast %30 : vector<32x256xf32> to vector<1x32x256xf32>
    tpu.vector_store %arg6[%c0_14, %c0_15, %c0_16], %33 {strides = array<i32>} : memref<1x32x256xf32, #tpu.memory_space<vmem>>, vector<1x32x256xf32>,
    return
  }
  func.func @transform_0(%arg0: i32, %arg1: i32) -> (i32, i32, i32) {
    %c0_i32 = arith.constant 0 : i32
    %c0_i32_0 = arith.constant 0 : i32
    return %arg0, %c0_i32, %arg1 : i32, i32, i32
  }
  func.func @transform_1(%arg0: i32, %arg1: i32) -> (i32, i32) {
    %c0_i32 = arith.constant 0 : i32
    %c0_i32_0 = arith.constant 0 : i32
    %c0_i32_1 = arith.constant 0 : i32
    return %c0_i32, %c0_i32_0 : i32, i32
  }
  func.func @transform_2(%arg0: i32, %arg1: i32) -> (i32, i32) {
    %c0_i32 = arith.constant 0 : i32
    %c0_i32_0 = arith.constant 0 : i32
    %c0_i32_1 = arith.constant 0 : i32
    return %c0_i32, %c0_i32_0 : i32, i32
  }
  func.func @transform_3(%arg0: i32, %arg1: i32) -> (i32, i32) {
    %c0_i32 = arith.constant 0 : i32
    %c0_i32_0 = arith.constant 0 : i32
    %c0_i32_1 = arith.constant 0 : i32
    return %c0_i32, %c0_i32_0 : i32, i32
  }
  func.func @transform_4(%arg0: i32, %arg1: i32) -> (i32, i32, i32) {
    %c0_i32 = arith.constant 0 : i32
    %c0_i32_0 = arith.constant 0 : i32
    return %arg0, %c0_i32, %arg1 : i32, i32, i32
  }
}

</mosaic_0001>

<llo_original>
// kernel: tpu_custom_call.1
$region0: #{tpu_custom_call.1}
  #allocation0 [shape = 'u32[]', space=smem, size = 0x4, offset = 0x4, fixed_abs, tag = 'smem constant byte address 0x4 - core index']
  #allocation1 [shape = 'u32[144,128]{1,0:T(1,128)}', space=vmem, size = 0x12000, scoped, tag = 'internal scratch']
  %s0 = inlined_call_operand.hbm [shape: f32[2,32,256], index: 0, kind: input, shape index: {}]
  %s1 = inlined_call_operand.vmem [shape: f32[32,32], index: 1, kind: input, shape index: {}]
  %s2 = inlined_call_operand.vmem [shape: f32[32,1], index: 2, kind: input, shape index: {}]
  %s3 = inlined_call_operand.vmem [shape: f32[32,1], index: 3, kind: input, shape index: {}]
  %s4 = inlined_call_operand.hbm [shape: f32[2,32,256], index: 4, kind: output, shape index: {}]
  %s5 = sld [smem:[#allocation0]]
  $region53: #{tpu_custom_call.1} parent=0
    _
  %s7 = ssub.s32 1, %s5
  %s8 = scalar_select 0, %s7, %s5
  $region1: #{tpu_custom_call.1} parent=0
    #allocation2 [shape = 'u8[65536]{0}', space=vmem, size = 0x10000, scoped, tag = 'input window, operand 0']
    #allocation3 [shape = 's32[2]{0}', space=sflag, size = 0x8, scoped, tag = 'scoped memory for tpu_custom_call.1']
    #allocation4 [shape = 's32[2]{0}', space=sflag, size = 0x8, scoped, tag = 'scoped memory for tpu_custom_call.1']
    #allocation5 [shape = 'u8[65536]{0}', space=vmem, size = 0x10000, scoped, tag = 'output window, operand 0']
    %9 = vsyncpa [#allocation3], 0
    %s10 = scalar_lea.sflag [#allocation3], 1
    %11 = vsyncpa %s10, 0
    %12 = vsyncpa [#allocation4], 0
    %s13 = scalar_lea.sflag [#allocation4], 1
    %14 = vsyncpa %s13, 0
    loop: start=0, step=1, limit=4
    $region2: #{tpu_custom_call.1} parent=1 // loop_pre_header
      _
    $region3: #{tpu_custom_call.1} parent=1 // loop_header
      %s16 = sphi 0, %s20
      %p17 = scmp.ge.s32.totalorder %s16, 4
      %s23 = sphi 0, %s35
      %s24 = sphi 0, %s31
      %s25 = sphi 0, %s23
      %s26 = sphi 0, %s24
      %s27 = sphi 0, %s25
      %s28 = sphi 0, %s26
      %s40 = sphi 0, %s42
      %s43 = sphi 0, %s40
      %s44 = sphi 0, %s43
      %s60 = sphi 0, %s44
      %s64 = sphi 0, %s64
      %s66 = sphi 0, %s64
      %s67 = sphi 0, %s66
      %s81 = sphi 0, %s67
      %s85 = sphi 0, %s85
      %s87 = sphi 0, %s85
      %s88 = sphi 0, %s87
      %s102 = sphi 0, %s88
      %s106 = sphi 0, %s106
      %s108 = sphi 0, %s106
      %s109 = sphi 0, %s108
      %s123 = sphi 0, %s109
      %s131 = sphi 0, %s133
      %s134 = sphi 0, %s131
      %s135 = sphi 0, %s134
      %s151 = sphi 0, %s135
    $region4: #{tpu_custom_call.1} parent=1 // loop_header_branch
      %19 = sbr.rel (%p17) target = $region8
    $region5: #{tpu_custom_call.1} parent=1 // loop_body
      %s21 = ssub.s32 %s16, 1
      %s22 = ssub.s32 %s16, 2
      %s29 = sadd.s32 1, %s24
      %p30 = scmp.ge.s32.totalorder %s29, 1
      %s31 = scalar_select %p30, 0, %s29
      %s32 = sadd.s32 1, %s23
      %s33 = scalar_select %p30, %s32, %s23
      %p34 = scmp.ge.s32.totalorder %s33, 2
      %s35 = scalar_select %p34, 0, %s33
      %s36 = ssub.s32 %s23, %s35
      %s37 = ssub.s32 %s24, %s31
      %s38 = sor.u32 %s36, %s37
      %p39 = scmp.eq.s32.totalorder %s38, 0
      %s41 = sadd.s32 %s40, 1
      %s42 = scalar_select %p39, %s40, %s41
      %p45 = pneg %p39
      %p46 = scmp.eq.s32.totalorder %s16, 1
      %p47 = por %p45, %p46
      %p48 = scmp.ne.s32.totalorder %s40, %s43
      %p49 = scmp.eq.s32.totalorder %s16, 0
      %p50 = por %p48, %p49
      %p51 = scmp.ne.s32.totalorder %s40, %s43
      %p52 = scmp.eq.s32.totalorder %s21, 1
      %p53 = por %p51, %p52
      %p54 = scmp.ne.s32.totalorder %s43, %s44
      %p55 = scmp.eq.s32.totalorder %s21, 0
      %p56 = por %p54, %p55
      %p57 = scmp.ne.s32.totalorder %s43, %s44
      %p58 = scmp.eq.s32.totalorder %s22, 1
      %p59 = por %p57, %p58
      %p61 = scmp.ne.s32.totalorder %s44, %s60
      %p62 = scmp.eq.s32.totalorder %s22, 0
      %p63 = por %p61, %p62
      %s65 = sadd.s32 %s64, 1
      %p68 = scmp.eq.s32.totalorder %s16, 1
      %p69 = scmp.ne.s32.totalorder %s64, %s66
      %p70 = scmp.eq.s32.totalorder %s16, 0
      %p71 = por %p69, %p70
      %p72 = scmp.ne.s32.totalorder %s64, %s66
      %p73 = scmp.eq.s32.totalorder %s21, 1
      %p74 = por %p72, %p73
      %p75 = scmp.ne.s32.totalorder %s66, %s67
      %p76 = scmp.eq.s32.totalorder %s21, 0
      %p77 = por %p75, %p76
      %p78 = scmp.ne.s32.totalorder %s66, %s67
      %p79 = scmp.eq.s32.totalorder %s22, 1
      %p80 = por %p78, %p79
      %p82 = scmp.ne.s32.totalorder %s67, %s81
      %p83 = scmp.eq.s32.totalorder %s22, 0
      %p84 = por %p82, %p83
      %s86 = sadd.s32 %s85, 1
      %p89 = scmp.eq.s32.totalorder %s16, 1
      %p90 = scmp.ne.s32.totalorder %s85, %s87
      %p91 = scmp.eq.s32.totalorder %s16, 0
      %p92 = por %p90, %p91
      %p93 = scmp.ne.s32.totalorder %s85, %s87
      %p94 = scmp.eq.s32.totalorder %s21, 1
      %p95 = por %p93, %p94
      %p96 = scmp.ne.s32.totalorder %s87, %s88
      %p97 = scmp.eq.s32.totalorder %s21, 0
      %p98 = por %p96, %p97
      %p99 = scmp.ne.s32.totalorder %s87, %s88
      %p100 = scmp.eq.s32.totalorder %s22, 1
      %p101 = por %p99, %p100
      %p103 = scmp.ne.s32.totalorder %s88, %s102
      %p104 = scmp.eq.s32.totalorder %s22, 0
      %p105 = por %p103, %p104
      %s107 = sadd.s32 %s106, 1
      %p110 = scmp.eq.s32.totalorder %s16, 1
      %p111 = scmp.ne.s32.totalorder %s106, %s108
      %p112 = scmp.eq.s32.totalorder %s16, 0
      %p113 = por %p111, %p112
      %p114 = scmp.ne.s32.totalorder %s106, %s108
      %p115 = scmp.eq.s32.totalorder %s21, 1
      %p116 = por %p114, %p115
      %p117 = scmp.ne.s32.totalorder %s108, %s109
      %p118 = scmp.eq.s32.totalorder %s21, 0
      %p119 = por %p117, %p118
      %p120 = scmp.ne.s32.totalorder %s108, %s109
      %p121 = scmp.eq.s32.totalorder %s22, 1
      %p122 = por %p120, %p121
      %p124 = scmp.ne.s32.totalorder %s109, %s123
      %p125 = scmp.eq.s32.totalorder %s22, 0
      %p126 = por %p124, %p125
      %s127 = ssub.s32 %s23, %s35
      %s128 = ssub.s32 %s24, %s31
      %s129 = sor.u32 %s127, %s128
      %p130 = scmp.eq.s32.totalorder %s129, 0
      %s132 = sadd.s32 %s131, 1
      %s133 = scalar_select %p130, %s131, %s132
      %p136 = pneg %p130
      %p137 = scmp.eq.s32.totalorder %s16, 1
      %p138 = por %p136, %p137
      %p139 = scmp.ne.s32.totalorder %s131, %s134
      %p140 = scmp.eq.s32.totalorder %s16, 0
      %p141 = por %p139, %p140
      %p142 = scmp.ne.s32.totalorder %s131, %s134
      %p143 = scmp.eq.s32.totalorder %s21, 1
      %p144 = por %p142, %p143
      %p145 = scmp.ne.s32.totalorder %s134, %s135
      %p146 = scmp.eq.s32.totalorder %s21, 0
      %p147 = por %p145, %p146
      %p148 = scmp.ne.s32.totalorder %s134, %s135
      %p149 = scmp.eq.s32.totalorder %s22, 1
      %p150 = por %p148, %p149
      %p152 = scmp.ne.s32.totalorder %s135, %s151
      %p153 = scmp.eq.s32.totalorder %s22, 0
      %p154 = por %p152, %p153
      %p155 = scmp.le.s32.totalorder 1, %s16
      %p156 = scmp.lt.s32.totalorder %s16, 3
      %p157 = pnand %p155, %p156
      %p158 = pneg %p157
      // Predicated region
      $region9: #{tpu_custom_call.1} parent=5 // pred_check
        _
      $region10: #{tpu_custom_call.1} parent=5 // pred_check_branch
        %160 = sbr.rel (%p157) target = $region12
      $region11: #{tpu_custom_call.1} parent=5 // pred_region
        %s161 = ssub.s32 %s16, 1
        // Predicated region
        $region13: #{tpu_custom_call.1} parent=11 // pred_check
          %p162 = pneg %p77
        $region14: #{tpu_custom_call.1} parent=11 // pred_check_branch
          %164 = sbr.rel (%p162) target = $region16
        $region15: #{tpu_custom_call.1} parent=11 // pred_region
          _
        $region16: #{tpu_custom_call.1} parent=11 // pred_fallthru
          _
        // Predicated region
        $region17: #{tpu_custom_call.1} parent=11 // pred_check
          %p165 = pneg %p98
        $region18: #{tpu_custom_call.1} parent=11 // pred_check_branch
          %167 = sbr.rel (%p165) target = $region20
        $region19: #{tpu_custom_call.1} parent=11 // pred_region
          _
        $region20: #{tpu_custom_call.1} parent=11 // pred_fallthru
          _
        // Predicated region
        $region21: #{tpu_custom_call.1} parent=11 // pred_check
          %p168 = pneg %p119
        $region22: #{tpu_custom_call.1} parent=11 // pred_check_branch
          %170 = sbr.rel (%p168) target = $region24
        $region23: #{tpu_custom_call.1} parent=11 // pred_region
          _
        $region24: #{tpu_custom_call.1} parent=11 // pred_fallthru
          _
      $region12: #{tpu_custom_call.1} parent=5 // pred_fallthru
        _
      %p171 = scmp.lt.s32.totalorder %s16, 2
      // Predicated region
      $region25: #{tpu_custom_call.1} parent=5 // pred_check
        %p172 = pneg %p171
      $region26: #{tpu_custom_call.1} parent=5 // pred_check_branch
        %174 = sbr.rel (%p172) target = $region28
      $region27: #{tpu_custom_call.1} parent=5 // pred_region
        // Predicated region
        $region29: #{tpu_custom_call.1} parent=27 // pred_check
          %p175 = pneg %p50
        $region30: #{tpu_custom_call.1} parent=27 // pred_check_branch
          %177 = sbr.rel (%p175) target = $region32
        $region31: #{tpu_custom_call.1} parent=27 // pred_region
          %s178 = sand.u32 %s40, 1
          %s179 = scalar_lea.sflag [#allocation3], %s178
          %s180 = sand.u32 %s40, 1
          %s181 = smul.addr %s180, 64
          %s182 = scalar_lea.vmem [#allocation2], %s181
          %s183 = smul.u32 2, %s24
          %s185 = ssub.s32 1024, 1024
          %186 = vsyncadd %s179, %s185
          %s187 = smul.addr %s23, 8
          %s188 = sadd.s32 %s183, %s187
          %s189 = smul.addr %s188, 128
          %s190 = scalar_lea.hbm %s0, %s189
          %s191 = sshll.u32 %s182, 4
          %s192 = int_to_ptr.vmem [resolvable:$true] %s191
          %197 = dma.hbm_to_vmem [thread:$0]  %s190, 1024, %s192, %s179, 256, 256, 16
        $region32: #{tpu_custom_call.1} parent=27 // pred_fallthru
          _
      $region28: #{tpu_custom_call.1} parent=5 // pred_fallthru
        _
      %p198 = scmp.le.s32.totalorder 1, %s16
      %p199 = scmp.lt.s32.totalorder %s16, 3
      %p200 = pnand %p198, %p199
      %p201 = pneg %p200
      // Predicated region
      $region33: #{tpu_custom_call.1} parent=5 // pred_check
        _
      $region34: #{tpu_custom_call.1} parent=5 // pred_check_branch
        %203 = sbr.rel (%p200) target = $region36
      $region35: #{tpu_custom_call.1} parent=5 // pred_region
        %s204 = ssub.s32 %s16, 1
        %s205 = sand.u32 %s43, 1
        %s206 = scalar_lea.sflag [#allocation3], %s205
        %s207 = sand.u32 %s43, 1
        %s208 = smul.addr %s207, 64
        %s209 = scalar_lea.vmem [#allocation2], %s208
        // Predicated region
        $region37: #{tpu_custom_call.1} parent=35 // pred_check
          %p210 = pneg %p56
        $region38: #{tpu_custom_call.1} parent=35 // pred_check_branch
          %212 = sbr.rel (%p210) target = $region40
        $region39: #{tpu_custom_call.1} parent=35 // pred_region
          %213 = dma.done %s206, 1024
        $region40: #{tpu_custom_call.1} parent=35 // pred_fallthru
          _
        %s214 = sand.u32 %s43, 1
        %s215 = scalar_lea.sflag [#allocation3], %s214
        %s216 = sand.u32 %s43, 1
        %s217 = smul.addr %s216, 64
        %s218 = scalar_lea.vmem [#allocation2], %s217
        %p219 = pneg %p56
        %p220 = pneg %p53
        %p221 = pneg %p77
        %p222 = pneg %p74
        %p223 = pneg %p98
        %p224 = pneg %p95
        %p225 = pneg %p119
        %p226 = pneg %p116
        %p227 = pneg %p147
        %p228 = pneg %p144
        %s229 = sand.u32 %s134, 1
        %s230 = scalar_lea.sflag [#allocation4], %s229
        %s231 = sand.u32 %s134, 1
        %s232 = smul.addr %s231, 64
        %s233 = scalar_lea.vmem [#allocation5], %s232
        %s234 = smul.u32 2, %s26
        %s235 = smul.u32 2, %s26
        %v236 = vld [vmem:[%s209] sm:$0xff]
        %v237 = vld [vmem:[%s209 + $0x8] sm:$0xff]
        %v238 = vld [vmem:[%s209 + $0x10] sm:$0xff]
        %v239 = vld [vmem:[%s209 + $0x18] sm:$0xff]
        %v240 = vld [vmem:[%s209 + $0x20] sm:$0xff]
        %v241 = vld [vmem:[%s209 + $0x28] sm:$0xff]
        %v242 = vld [vmem:[%s209 + $0x30] sm:$0xff]
        %v243 = vld [vmem:[%s209 + $0x38] sm:$0xff]
        %v244 = vadd.f32 %v236, %v238
        %v245 = vadd.f32 %v244, %v240
        %v246 = vadd.f32 %v245, %v242
        %v247 = vrot.slane %v246, 4
        %v248 = vadd.f32 %v246, %v247
        %v249 = vrot.slane %v248, 2
        %v250 = vadd.f32 %v248, %v249
        %v251 = vrot.slane %v250, 1
        %v252 = vadd.f32 %v250, %v251
        %v253 = vadd.f32 %v237, %v239
        %v254 = vadd.f32 %v253, %v241
        %v255 = vadd.f32 %v254, %v243
        %v256 = vrot.slane %v255, 4
        %v257 = vadd.f32 %v255, %v256
        %v258 = vrot.slane %v257, 2
        %v259 = vadd.f32 %v257, %v258
        %v260 = vrot.slane %v259, 1
        %v261 = vadd.f32 %v259, %v260
        %v262 = vrcp.pop 32.0
        %v263 = vmul.f32 %v252, %v262
        %v264 = vmul.f32 %v261, %v262
        %v265 = vmul.f32 %v236, %v236
        %v266 = vmul.f32 %v237, %v237
        %v267 = vmul.f32 %v238, %v238
        %v268 = vmul.f32 %v239, %v239
        %v269 = vmul.f32 %v240, %v240
        %v270 = vmul.f32 %v241, %v241
        %v271 = vmul.f32 %v242, %v242
        %v272 = vmul.f32 %v243, %v243
        %v273 = vadd.f32 %v265, %v267
        %v274 = vadd.f32 %v273, %v269
        %v275 = vadd.f32 %v274, %v271
        %v276 = vrot.slane %v275, 4
        %v277 = vadd.f32 %v275, %v276
        %v278 = vrot.slane %v277, 2
        %v279 = vadd.f32 %v277, %v278
        %v280 = vrot.slane %v279, 1
        %v281 = vadd.f32 %v279, %v280
        %v282 = vadd.f32 %v266, %v268
        %v283 = vadd.f32 %v282, %v270
        %v284 = vadd.f32 %v283, %v272
        %v285 = vrot.slane %v284, 4
        %v286 = vadd.f32 %v284, %v285
        %v287 = vrot.slane %v286, 2
        %v288 = vadd.f32 %v286, %v287
        %v289 = vrot.slane %v288, 1
        %v290 = vadd.f32 %v288, %v289
        %v291 = vmul.f32 %v281, %v262
        %v292 = vmul.f32 %v290, %v262
        %v293 = vmul.f32 %v263, %v263
        %v294 = vmul.f32 %v264, %v264
        %v295 = vsub.f32 %v291, %v293
        %v296 = vsub.f32 %v292, %v294
        %v297 = vmax.f32 %v295, 0.0
        %v298 = vmax.f32 %v296, 0.0
        %v299 = vrsqrt.pop %v297
        %v300 = vmul.f32 %v297, %v299
        %vm301 = vcmp.eq.f32.partialorder %v297, inf
        %v302 = vsel %vm301, %v297, %v300
        %vm303 = vcmp.eq.f32.partialorder %v297, 0.0
        %v304 = vand.u32 %v297, 2147483648
        %v305 = vsel %vm303, %v304, %v302
        %v306 = vrsqrt.pop %v298
        %v307 = vmul.f32 %v298, %v306
        %vm308 = vcmp.eq.f32.partialorder %v298, inf
        %v309 = vsel %vm308, %v298, %v307
        %vm310 = vcmp.eq.f32.partialorder %v298, 0.0
        %v311 = vand.u32 %v298, 2147483648
        %v312 = vsel %vm310, %v311, %v309
        %v313 = vadd.f32 %v305, 1e-05
        %v314 = vadd.f32 %v312, 1e-05
        %v315 = vrcp.pop %v313
        %v316 = vrcp.pop %v314
        %v317 = vld [vmem:[%s1] sm:$0xff]
        %v318 = vld [vmem:[%s1 + $0x8] sm:$0xff]
        %v319 = vld [vmem:[%s1 + $0x10] sm:$0xff]
        %v320 = vld [vmem:[%s1 + $0x18] sm:$0xff]
        %vm321 = vcmask 261120
        %v323 = vsel %vm321, %v317, 0
        %v326 = vsel %vm321, %v318, 0
        %v329 = vsel %vm321, %v319, 0
        %v332 = vsel %vm321, %v320, 0
        %334 = vmatprep.subr.mxu0 %v237
        %335 = vmatpush1.msra.mxu0 %v236
        %336 = vmatprep.subr.mxu0 %v239
        %337 = vmatpush1.msra.mxu0 %v238
        %338 = vmatprep.subr.mxu0 %v241
        %339 = vmatpush1.msra.mxu0 %v240
        %340 = vmatprep.subr.mxu0 %v243
        %341 = vmatpush1.msra.mxu0 %v242
        %342 = vmatprep.subr.mxu0 0.0
        %343 = vmatpush1.msra.mxu0 0.0
        %344 = vmatprep.subr.mxu0 0.0
        %345 = vmatpush1.msra.mxu0 0.0
        %346 = vmatprep.subr.mxu0 0.0
        %347 = vmatpush1.msra.mxu0 0.0
        %348 = vmatprep.subr.mxu0 0.0
        %349 = vmatpush1.msra.mxu0 0.0
        %350 = vmatprep.subr.mxu0 0.0
        %351 = vmatpush1.msra.mxu0 0.0
        %352 = vmatprep.subr.mxu0 0.0
        %353 = vmatpush1.msra.mxu0 0.0
        %354 = vmatprep.subr.mxu0 0.0
        %355 = vmatpush1.msra.mxu0 0.0
        %356 = vmatprep.subr.mxu0 0.0
        %357 = vmatpush1.msra.mxu0 0.0
        %358 = vmatprep.subr.mxu0 0.0
        %359 = vmatpush1.msra.mxu0 0.0
        %360 = vmatprep.subr.mxu0 0.0
        %361 = vmatpush1.msra.mxu0 0.0
        %362 = vmatprep.subr.mxu0 0.0
        %363 = vmatpush1.msra.mxu0 0.0
        %364 = vmatprep.subr.mxu0 0.0
        %365 = vmatpush1.msra.mxu0 0.0
        %366 = vmatprep.subr.mxu0 0.0
        %367 = vmatpush1.msra.mxu0 0.0
        %368 = vmatprep.subr.mxu0 0.0
        %369 = vmatpush1.msra.mxu0 0.0
        %370 = vmatprep.subr.mxu0 0.0
        %371 = vmatpush1.msra.mxu0 0.0
        %372 = vmatprep.subr.mxu0 0.0
        %373 = vmatpush1.msra.mxu0 0.0
        %374 = vmatprep.subr.mxu0 0.0
        %375 = vmatpush1.msra.mxu0 0.0
        %376 = vmatprep.subr.mxu0 0.0
        %377 = vmatpush1.msra.mxu0 0.0
        %378 = vmatprep.subr.mxu0 0.0
        %379 = vmatpush1.msra.mxu0 0.0
        %380 = vmatprep.subr.mxu0 0.0
        %381 = vmatpush1.msra.mxu0 0.0
        %382 = vmatprep.subr.mxu0 0.0
        %383 = vmatpush1.msra.mxu0 0.0
        %384 = vmatprep.subr.mxu0 0.0
        %385 = vmatpush1.msra.mxu0 0.0
        %386 = vmatprep.subr.mxu0 0.0
        %387 = vmatpush1.msra.mxu0 0.0
        %388 = vmatprep.subr.mxu0 0.0
        %389 = vmatpush1.msra.mxu0 0.0
        %390 = vmatprep.subr.mxu0 0.0
        %391 = vmatpush1.msra.mxu0 0.0
        %392 = vmatprep.subr.mxu0 0.0
        %393 = vmatpush1.msra.mxu0 0.0
        %394 = vmatprep.subr.mxu0 0.0
        %395 = vmatpush1.msra.mxu0 0.0
        %396 = vmatprep.subr.mxu0 0.0
        %397 = vmatpush1.msra.mxu0 0.0
        %398 = vmatprep.mubr.f32.mxu0 0.0
        %399 = vmatmul.mubr.f32.gmra.mrb[0].mxu0 %v323
        %v400 = vpop.f32.mrb[0].mxu0
        %v401 = vadd.f32 0.0, %v400
        %v402 = vpop.f32.mrb[0].mxu0
        %v403 = vadd.f32 0.0, %v402
        %404 = vmatprep.mubr.f32.mxu0 0.0
        %405 = vmatmul.mubr.f32.gmra.mrb[0].mxu0 %v326
        %v406 = vpop.f32.mrb[0].mxu0
        %v407 = vadd.f32 0.0, %v406
        %v408 = vpop.f32.mrb[0].mxu0
        %v409 = vadd.f32 0.0, %v408
        %410 = vmatprep.mubr.f32.mxu0 0.0
        %411 = vmatmul.mubr.f32.gmra.mrb[0].mxu0 %v329
        %v412 = vpop.f32.mrb[0].mxu0
        %v413 = vadd.f32 0.0, %v412
        %v414 = vpop.f32.mrb[0].mxu0
        %v415 = vadd.f32 0.0, %v414
        %416 = vmatprep.mubr.f32.mxu0 0.0
        %417 = vmatmul.mubr.f32.gmra.mrb[0].mxu0 %v332
        %v418 = vpop.f32.mrb[0].mxu0
        %v419 = vadd.f32 0.0, %v418
        %v420 = vpop.f32.mrb[0].mxu0
        %v421 = vadd.f32 0.0, %v420
        %422 = vdwg.mxu0
        %v423 = vld [vmem:[%s2] sm:$0xff]
        %v424 = vld [vmem:[%s2 + $0x8] sm:$0xff]
        %v425 = vld [vmem:[%s2 + $0x10] sm:$0xff]
        %v426 = vld [vmem:[%s2 + $0x18] sm:$0xff]
        %428 = vset.pattern.permute.xlu0 0
        %429 = vperm.xlu0 %428, %v423
        %v430 = vpop.permute.xlu0 %429
        %433 = vset.pattern.permute.xlu0 0
        %434 = vperm.xlu0 %433, %v424
        %v435 = vpop.permute.xlu0 %434
        %438 = vset.pattern.permute.xlu0 0
        %439 = vperm.xlu0 %438, %v425
        %v440 = vpop.permute.xlu0 %439
        %443 = vset.pattern.permute.xlu0 0
        %444 = vperm.xlu0 %443, %v426
        %v445 = vpop.permute.xlu0 %444
        %v447 = vmul.f32 %v430, %v263
        %v448 = vmul.f32 %v430, %v264
        %v449 = vmul.f32 %v435, %v263
        %v450 = vmul.f32 %v435, %v264
        %v451 = vmul.f32 %v440, %v263
        %v452 = vmul.f32 %v440, %v264
        %v453 = vmul.f32 %v445, %v263
        %v454 = vmul.f32 %v445, %v264
        %v455 = vsub.f32 %v401, %v447
        %v456 = vsub.f32 %v403, %v448
        %v457 = vsub.f32 %v407, %v449
        %v458 = vsub.f32 %v409, %v450
        %v459 = vsub.f32 %v413, %v451
        %v460 = vsub.f32 %v415, %v452
        %v461 = vsub.f32 %v419, %v453
        %v462 = vsub.f32 %v421, %v454
        %v463 = vmul.f32 %v455, %v315
        %v464 = vmul.f32 %v456, %v316
        %v465 = vmul.f32 %v457, %v315
        %v466 = vmul.f32 %v458, %v316
        %v467 = vmul.f32 %v459, %v315
        %v468 = vmul.f32 %v460, %v316
        %v469 = vmul.f32 %v461, %v315
        %v470 = vmul.f32 %v462, %v316
        %v471 = vld [vmem:[%s3] sm:$0xff]
        %v472 = vld [vmem:[%s3 + $0x8] sm:$0xff]
        %v473 = vld [vmem:[%s3 + $0x10] sm:$0xff]
        %v474 = vld [vmem:[%s3 + $0x18] sm:$0xff]
        %476 = vset.pattern.permute.xlu0 0
        %477 = vperm.xlu0 %476, %v471
        %v478 = vpop.permute.xlu0 %477
        %481 = vset.pattern.permute.xlu0 0
        %482 = vperm.xlu0 %481, %v472
        %v483 = vpop.permute.xlu0 %482
        %486 = vset.pattern.permute.xlu0 0
        %487 = vperm.xlu0 %486, %v473
        %v488 = vpop.permute.xlu0 %487
        %491 = vset.pattern.permute.xlu0 0
        %492 = vperm.xlu0 %491, %v474
        %v493 = vpop.permute.xlu0 %492
        %v495 = vadd.f32 %v463, %v478
        %v496 = vadd.f32 %v464, %v478
        %v497 = vadd.f32 %v465, %v483
        %v498 = vadd.f32 %v466, %v483
        %v499 = vadd.f32 %v467, %v488
        %v500 = vadd.f32 %v468, %v488
        %v501 = vadd.f32 %v469, %v493
        %v502 = vadd.f32 %v470, %v493
        %503 = vst [vmem:[%s233] sm:$0xff] %v495
        %504 = vst [vmem:[%s233 + $0x8] sm:$0xff] %v496
        %505 = vst [vmem:[%s233 + $0x10] sm:$0xff] %v497
        %506 = vst [vmem:[%s233 + $0x18] sm:$0xff] %v498
        %507 = vst [vmem:[%s233 + $0x20] sm:$0xff] %v499
        %508 = vst [vmem:[%s233 + $0x28] sm:$0xff] %v500
        %509 = vst [vmem:[%s233 + $0x30] sm:$0xff] %v501
        %510 = vst [vmem:[%s233 + $0x38] sm:$0xff] %v502
        %s511 = sand.u32 %s134, 1
        %s512 = scalar_lea.sflag [#allocation4], %s511
        %s513 = sand.u32 %s134, 1
        %s514 = smul.addr %s513, 64
        %s515 = scalar_lea.vmem [#allocation5], %s514
        // Predicated region
        $region41: #{tpu_custom_call.1} parent=35 // pred_check
          %p516 = pneg %p144
        $region42: #{tpu_custom_call.1} parent=35 // pred_check_branch
          %518 = sbr.rel (%p516) target = $region44
        $region43: #{tpu_custom_call.1} parent=35 // pred_region
          %s519 = smul.u32 2, %s26
          %s521 = ssub.s32 1024, 1024
          %522 = vsyncadd %s512, %s521
          %s523 = smul.addr %s25, 8
          %s524 = sadd.s32 %s519, %s523
          %s525 = smul.addr %s524, 128
          %s526 = scalar_lea.hbm %s4, %s525
          %s527 = sshll.u32 %s515, 4
          %s528 = int_to_ptr.vmem [resolvable:$true] %s527
          %533 = dma.vmem_to_hbm [thread:$0]  %s528, 1024, %s526, %s512, 256, 256, 16
        $region44: #{tpu_custom_call.1} parent=35 // pred_fallthru
          _
      $region36: #{tpu_custom_call.1} parent=5 // pred_fallthru
        _
      %p534 = scmp.le.s32.totalorder 2, %s16
      // Predicated region
      $region45: #{tpu_custom_call.1} parent=5 // pred_check
        %p535 = pneg %p534
      $region46: #{tpu_custom_call.1} parent=5 // pred_check_branch
        %537 = sbr.rel (%p535) target = $region48
      $region47: #{tpu_custom_call.1} parent=5 // pred_region
        %s538 = ssub.s32 %s16, 2
        // Predicated region
        $region49: #{tpu_custom_call.1} parent=47 // pred_check
          %p539 = pneg %p150
        $region50: #{tpu_custom_call.1} parent=47 // pred_check_branch
          %541 = sbr.rel (%p539) target = $region52
        $region51: #{tpu_custom_call.1} parent=47 // pred_region
          %s542 = sand.u32 %s135, 1
          %s543 = scalar_lea.sflag [#allocation4], %s542
          %s544 = sand.u32 %s135, 1
          %s545 = smul.addr %s544, 64
          %s546 = scalar_lea.vmem [#allocation5], %s545
          %547 = dma.done %s543, 1024
        $region52: #{tpu_custom_call.1} parent=47 // pred_fallthru
          _
      $region48: #{tpu_custom_call.1} parent=5 // pred_fallthru
        _
    $region6: #{tpu_custom_call.1} parent=1 // loop_footer
      %s20 = sadd.s32 1, %s16
    $region7: #{tpu_custom_call.1} parent=1 // loop_footer_branch
      %15 = sbr.rel target = $region3
    $region8: #{tpu_custom_call.1} parent=1 // loop_exit
      _
    %548 = vsyncpa [#allocation3], 1
    %s549 = scalar_lea.sflag [#allocation3], 1
    %550 = vsyncpa %s549, 1
    %551 = vsyncpa [#allocation4], 1
    %s552 = scalar_lea.sflag [#allocation4], 1
    %553 = vsyncpa %s552, 1

</llo_original>
